<compile_context>
chip_gen: v5e
topology: v5e:2x2
jax: 0.10.0
libtpu: 0.0.40
codegen_flags: <defaults>
</compile_context>

<pallas_src>
import jax
import jax.numpy as jnp
from jax.experimental import pallas as pl
from jax.experimental.pallas import tpu as pltpu

# TODO(synk): the true AcadosSimSolver evaluates a user-supplied CasADi ODE via
# generated C code; that external function cannot be expressed in Pallas, so an
# affine ODE stands in for it while the RK4 integration semantics are preserved.

DT = 0.05       # integration horizon (sim.solver_options.T), compile-time constant
_LANE = 128     # TPU lane width
_SUBLANE = 8    # f32 sublane count


def _round_up(n: int, m: int) -> int:
    return ((n + m - 1) // m) * m


def _rk4_affine_kernel(z_ref, kT_ref, out_ref):
    """x_next = [x | u | p] @ [M | W]^T  (RK4 propagators precomputed outside)."""
    out_ref[...] = jnp.dot(
        z_ref[...], kT_ref[...], preferred_element_type=jnp.float32
    ).astype(out_ref.dtype)


def _pad2d(a, rows, cols):
    return jnp.pad(a, ((0, rows - a.shape[0]), (0, cols - a.shape[1])))


def acados_sim_forward(x, u, p, A, B, P, dt=DT, tile_b=512):
    """Pallas wrapper: one RK4 step of x_dot = A x + B u + P p. Returns (batch, nx)."""
    batch, nx = x.shape
    nu = u.shape[1]
    if p is None:
        p = jnp.zeros((batch, 1), dtype=x.dtype)
        P = jnp.zeros((nx, 1), dtype=x.dtype)
    npar = p.shape[1]

    f32 = jnp.float32
    A32, B32, P32 = A.astype(f32), B.astype(f32), P.astype(f32)

    # Exact RK4 propagators for the affine ODE (tiny nx x nx cost, outside kernel):
    #   M = I + dt A + dt^2/2 A^2 + dt^3/6 A^3 + dt^4/24 A^4
    #   G = dt I + dt^2/2 A + dt^3/6 A^2 + dt^4/24 A^3 ,   W = G @ [B | P]
    # NOTE: only valid while the stand-in dynamics remain affine.
    I = jnp.eye(nx, dtype=f32)
    A2 = A32 @ A32
    A3 = A2 @ A32
    A4 = A3 @ A32
    M = I + dt * A32 + (dt ** 2 / 2.0) * A2 + (dt ** 3 / 6.0) * A3 + (dt ** 4 / 24.0) * A4
    G = dt * I + (dt ** 2 / 2.0) * A32 + (dt ** 3 / 6.0) * A2 + (dt ** 4 / 24.0) * A3
    W = G @ jnp.concatenate([B32, P32], axis=1)            # (nx, nu + np)

    # Fuse state + input + parameter paths into one matmul:
    #   x_next = [x | u | p] @ [M | W]^T
    K = jnp.concatenate([M, W], axis=1)                    # (nx, nx + nu + np)

    # Lane-dense padded layout; weight pre-transposed so the kernel never
    # emits an XLU transpose.
    f_in = _round_up(nx + nu + npar, _LANE)
    f_out = _round_up(nx, _LANE)

    tb = min(tile_b, _round_up(batch, _SUBLANE))           # batch tile, mult of 8
    pb = _round_up(batch, tb)                              # padded batch

    z = jnp.concatenate([x, u, p], axis=1).astype(f32)     # (batch, nx+nu+np)
    zp = _pad2d(z, pb, f_in)                               # (pb, f_in)
    kT = _pad2d(K.T, f_in, f_out)                          # (f_in, f_out)

    out = pl.pallas_call(
        _rk4_affine_kernel,
        out_shape=jax.ShapeDtypeStruct((pb, f_out), x.dtype),
        grid=(pb // tb,),
        in_specs=[
            pl.BlockSpec((tb, f_in), lambda i: (i, 0)),    # [x|u|p] tile (pipelined)
            pl.BlockSpec((f_in, f_out), lambda i: (0, 0)),  # fused weight (resident)
        ],
        out_specs=pl.BlockSpec((tb, f_out), lambda i: (i, 0)),
        compiler_params=pltpu.CompilerParams(
            dimension_semantics=("parallel",),             # shards across v7x's 2 TCs
        ),
    )(zp, kT)

    return out[:batch, :nx]


def _reference(x, u, p, A, B, P, dt=DT):
    """Plain-JAX RK4 chain (module semantics for the affine stand-in ODE)."""
    const = u @ B.T + p @ P.T
    f = lambda xk: xk @ A.T + const
    k1 = f(x)
    k2 = f(x + 0.5 * dt * k1)
    k3 = f(x + 0.5 * dt * k2)
    k4 = f(x + dt * k3)
    return x + (dt / 6.0) * (k1 + 2.0 * k2 + 2.0 * k3 + k4)


if __name__ == "__main__":
    key = jax.random.PRNGKey(0)
    k_x, k_u, k_p, k_A, k_B, k_P = jax.random.split(key, 6)

    batch, nx, nu, npar = 8, 32, 16, 8

    x = jax.random.normal(k_x, (batch, nx), dtype=jnp.float32)
    u = jax.random.normal(k_u, (batch, nu), dtype=jnp.float32)
    p = jax.random.normal(k_p, (batch, npar), dtype=jnp.float32)

    # deterministic "dynamics" parameters (stable-ish linear system)
    A = 0.1 * jax.random.normal(k_A, (nx, nx), dtype=jnp.float32) - 0.5 * jnp.eye(
        nx, dtype=jnp.float32
    )
    B = 0.1 * jax.random.normal(k_B, (nx, nu), dtype=jnp.float32)
    P = 0.1 * jax.random.normal(k_P, (nx, npar), dtype=jnp.float32)

    out = acados_sim_forward(x, u, p, A, B, P)
    out = jax.block_until_ready(out)

    ref = _reference(x, u, p, A, B, P)
    assert out.shape == (batch, nx) and out.dtype == jnp.float32
    assert jnp.allclose(out, ref, atol=1e-4, rtol=1e-4), "mismatch vs reference"

    print("KERNEL_OK")
</pallas_src>

<mosaic_0001>
module attributes {stable_mosaic.version = 11 : i64} {
  func.func @_rk4_affine_kernel(%arg0: i32, %arg1: memref<8x128xf32, #tpu.memory_space<vmem>>, %arg2: memref<128x128xf32, #tpu.memory_space<vmem>>, %arg3: memref<8x128xf32, #tpu.memory_space<vmem>>) attributes {dimension_semantics = [#tpu.dimension_semantics<parallel>], iteration_bounds = array<i64: 1>, scalar_prefetch = 0 : i64, scratch_operands = 0 : i64, tpu.core_type = #tpu.core_type<tc>, window_params = [{transform_indices = @transform_0, window_bounds = array<i64: 8, 128>}, {pipeline_mode = #tpu.pipeline_mode<synchronous>, transform_indices = @transform_1, window_bounds = array<i64: 128, 128>}, {transform_indices = @transform_2, window_bounds = array<i64: 8, 128>}]} {
    %c0 = arith.constant 0 : index
    %c0_0 = arith.constant 0 : index
    %0 = vector.load %arg1[%c0, %c0_0] : memref<8x128xf32, #tpu.memory_space<vmem>>, vector<8x128xf32>
    %c0_1 = arith.constant 0 : index
    %c0_2 = arith.constant 0 : index
    %1 = vector.load %arg2[%c0_1, %c0_2] : memref<128x128xf32, #tpu.memory_space<vmem>>, vector<128x128xf32>
    %cst = arith.constant dense<0.000000e+00> : vector<8x128xf32>
    %2 = tpu.matmul %0, %1, %cst {dimension_numbers = #tpu.dot_dimension_numbers<[1], [0], [0], [1], [0, 0, 1, 1], [], []>} : vector<8x128xf32>, vector<128x128xf32>, vector<8x128xf32> -> vector<8x128xf32>
    %c0_3 = arith.constant 0 : index
    %c0_4 = arith.constant 0 : index
    %3 = vector.load %arg3[%c0_3, %c0_4] : memref<8x128xf32, #tpu.memory_space<vmem>>, vector<8x128xf32>
    tpu.vector_store %arg3[%c0_3, %c0_4], %2 {strides = array<i32>} : memref<8x128xf32, #tpu.memory_space<vmem>>, vector<8x128xf32>,
    return
  }
  func.func @transform_0(%arg0: i32) -> (i32, i32) {
    %c0_i32 = arith.constant 0 : i32
    %c0_i32_0 = arith.constant 0 : i32
    return %arg0, %c0_i32 : i32, i32
  }
  func.func @transform_1(%arg0: i32) -> (i32, i32) {
    %c0_i32 = arith.constant 0 : i32
    %c0_i32_0 = arith.constant 0 : i32
    %c0_i32_1 = arith.constant 0 : i32
    return %c0_i32, %c0_i32_0 : i32, i32
  }
  func.func @transform_2(%arg0: i32) -> (i32, i32) {
    %c0_i32 = arith.constant 0 : i32
    %c0_i32_0 = arith.constant 0 : i32
    return %arg0, %c0_i32 : i32, i32
  }
}

</mosaic_0001>

<llo_original>
// kernel: tpu_custom_call.1
$region0: #{tpu_custom_call.1}
  #allocation0 [shape = 'u32[]', space=smem, size = 0x4, offset = 0x4, fixed_abs, tag = 'smem constant byte address 0x4 - core index']
  #allocation1 [shape = 'u32[72,128]{1,0:T(1,128)}', space=vmem, size = 0x9000, scoped, tag = 'internal scratch']
  %s0 = inlined_call_operand.hbm [shape: f32[8,128], index: 0, kind: input, shape index: {}]
  %s1 = inlined_call_operand.hbm [shape: f32[128,128], index: 1, kind: input, shape index: {}]
  %s2 = inlined_call_operand.hbm [shape: f32[8,128], index: 2, kind: output, shape index: {}]
  %s3 = sld [smem:[#allocation0]]
  $region26: #{tpu_custom_call.1} parent=0
    _
  %s5 = ssub.s32 1, %s3
  %s6 = scalar_select 0, %s5, %s3
  $region1: #{tpu_custom_call.1} parent=0
    #allocation2 [shape = 'u8[4096]{0}', space=vmem, size = 0x1000, scoped, tag = 'input window, operand 0, single buffered']
    #allocation3 [shape = 's32[1]{0}', space=sflag, size = 0x4, scoped, tag = 'scoped memory for tpu_custom_call.1']
    #allocation4 [shape = 's32[1]{0}', space=sflag, size = 0x4, scoped, tag = 'scoped memory for tpu_custom_call.1']
    #allocation5 [shape = 'u8[65536]{0}', space=vmem, size = 0x10000, scoped, tag = 'input window, operand 1, single buffered']
    #allocation6 [shape = 's32[1]{0}', space=sflag, size = 0x4, scoped, tag = 'scoped memory for tpu_custom_call.1']
    #allocation7 [shape = 'u8[4096]{0}', space=vmem, size = 0x1000, scoped, tag = 'output window, operand 0, single buffered']
    %7 = vsyncpa [#allocation3], 0
    %8 = vsyncpa [#allocation6], 0
    %9 = vsyncpa [#allocation4], 0
    // Predicated region
    $region2: #{tpu_custom_call.1} parent=1 // pred_check
      _
    $region3: #{tpu_custom_call.1} parent=1 // pred_check_branch
      %11 = sbr.rel (0) target = $region5
    $region4: #{tpu_custom_call.1} parent=1 // pred_region
      %13 = vsyncadd [#allocation3], 0
      %s15 = sshll.u32 %s0, 4
      %s16 = int_to_ptr.hbm [resolvable:$true] %s15
      %s17 = sshll.u32 [#allocation2], 4
      %s18 = int_to_ptr.vmem [resolvable:$true] %s17
      %20 = dma.hbm_to_vmem [thread:$0]  %s16, 128, %s18, [#allocation3]
    $region5: #{tpu_custom_call.1} parent=1 // pred_fallthru
      _
    // Predicated region
    $region6: #{tpu_custom_call.1} parent=1 // pred_check
      _
    $region7: #{tpu_custom_call.1} parent=1 // pred_check_branch
      %22 = sbr.rel (0) target = $region9
    $region8: #{tpu_custom_call.1} parent=1 // pred_region
      %24 = vsyncadd [#allocation6], 0
      %s25 = sshll.u32 %s1, 4
      %s26 = int_to_ptr.hbm [resolvable:$true] %s25
      %s27 = sshll.u32 [#allocation5], 4
      %s28 = int_to_ptr.vmem [resolvable:$true] %s27
      %33 = dma.hbm_to_vmem [thread:$0]  %s26, 2048, %s28, [#allocation6], 128, 128, 8
    $region9: #{tpu_custom_call.1} parent=1 // pred_fallthru
      _
    // Predicated region
    $region10: #{tpu_custom_call.1} parent=1 // pred_check
      _
    $region11: #{tpu_custom_call.1} parent=1 // pred_check_branch
      %35 = sbr.rel (0) target = $region13
    $region12: #{tpu_custom_call.1} parent=1 // pred_region
      %37 = dma.done [#allocation3], 128
    $region13: #{tpu_custom_call.1} parent=1 // pred_fallthru
      _
    // Predicated region
    $region14: #{tpu_custom_call.1} parent=1 // pred_check
      _
    $region15: #{tpu_custom_call.1} parent=1 // pred_check_branch
      %39 = sbr.rel (0) target = $region17
    $region16: #{tpu_custom_call.1} parent=1 // pred_region
      %41 = dma.done [#allocation6], 2048
    $region17: #{tpu_custom_call.1} parent=1 // pred_fallthru
      _
    %v42 = vld [vmem:[#allocation2] sm:$0xff]
    %v43 = vld [vmem:[#allocation5] sm:$0xff]
    %v44 = vld [vmem:[#allocation5 + $0x8] sm:$0xff]
    %v45 = vld [vmem:[#allocation5 + $0x10] sm:$0xff]
    %v46 = vld [vmem:[#allocation5 + $0x18] sm:$0xff]
    %v47 = vld [vmem:[#allocation5 + $0x20] sm:$0xff]
    %v48 = vld [vmem:[#allocation5 + $0x28] sm:$0xff]
    %v49 = vld [vmem:[#allocation5 + $0x30] sm:$0xff]
    %v50 = vld [vmem:[#allocation5 + $0x38] sm:$0xff]
    %v51 = vld [vmem:[#allocation5 + $0x40] sm:$0xff]
    %v52 = vld [vmem:[#allocation5 + $0x48] sm:$0xff]
    %v53 = vld [vmem:[#allocation5 + $0x50] sm:$0xff]
    %v54 = vld [vmem:[#allocation5 + $0x58] sm:$0xff]
    %v55 = vld [vmem:[#allocation5 + $0x60] sm:$0xff]
    %v56 = vld [vmem:[#allocation5 + $0x68] sm:$0xff]
    %v57 = vld [vmem:[#allocation5 + $0x70] sm:$0xff]
    %v58 = vld [vmem:[#allocation5 + $0x78] sm:$0xff]
    %59 = vmatpush.msra.mxu0 %v58
    %60 = vmatpush.msra.mxu0 %v57
    %61 = vmatpush.msra.mxu0 %v56
    %62 = vmatpush.msra.mxu0 %v55
    %63 = vmatpush.msra.mxu0 %v54
    %64 = vmatpush.msra.mxu0 %v53
    %65 = vmatpush.msra.mxu0 %v52
    %66 = vmatpush.msra.mxu0 %v51
    %67 = vmatpush.msra.mxu0 %v50
    %68 = vmatpush.msra.mxu0 %v49
    %69 = vmatpush.msra.mxu0 %v48
    %70 = vmatpush.msra.mxu0 %v47
    %71 = vmatpush.msra.mxu0 %v46
    %72 = vmatpush.msra.mxu0 %v45
    %73 = vmatpush.msra.mxu0 %v44
    %74 = vmatpush.msra.mxu0 %v43
    %75 = vmatmul.f32.gmra.mxu0 %v42
    %v76 = vpop.f32.mrf.mxu0
    %v77 = vadd.f32 0.0, %v76
    %78 = vdwg.mxu0
    %79 = vst [vmem:[#allocation7] sm:$0xff] %v77
    // Predicated region
    $region18: #{tpu_custom_call.1} parent=1 // pred_check
      _
    $region19: #{tpu_custom_call.1} parent=1 // pred_check_branch
      %81 = sbr.rel (0) target = $region21
    $region20: #{tpu_custom_call.1} parent=1 // pred_region
      %83 = vsyncadd [#allocation4], 0
      %s85 = sshll.u32 [#allocation7], 4
      %s86 = int_to_ptr.vmem [resolvable:$true] %s85
      %s87 = sshll.u32 %s2, 4
      %s88 = int_to_ptr.hbm [resolvable:$true] %s87
      %90 = dma.vmem_to_hbm [thread:$0]  %s86, 128, %s88, [#allocation4]
    $region21: #{tpu_custom_call.1} parent=1 // pred_fallthru
      _
    // Predicated region
    $region22: #{tpu_custom_call.1} parent=1 // pred_check
      _
    $region23: #{tpu_custom_call.1} parent=1 // pred_check_branch
      %92 = sbr.rel (0) target = $region25
    $region24: #{tpu_custom_call.1} parent=1 // pred_region
      %94 = dma.done [#allocation4], 128
    $region25: #{tpu_custom_call.1} parent=1 // pred_fallthru
      _
    %95 = vsyncpa [#allocation3], 1
    %96 = vsyncpa [#allocation6], 1
    %97 = vsyncpa [#allocation4], 1

</llo_original>
